<compile_context>
chip_gen: v7x
topology: tpu7x:2x2x1
jax: 0.10.0
libtpu: 0.0.40
codegen_flags: <defaults>
</compile_context>

<pallas_src>
import math
from functools import partial

import jax
import jax.numpy as jnp
from jax.experimental import pallas as pl
from jax.experimental.pallas import tpu as pltpu

BN_EPS = 1e-5
LEAKY_SLOPE = 0.2
LANES = 128


def _round_up(x, m):
    return (x + m - 1) // m * m


def _cdiv(a, b):
    return -(-a // b)


def _tpu_params():
    """Generation-aware (vmem_limit_bytes, lane-tile target)."""
    vmem_limit = 48 << 20          # safe everywhere (v7x physical VMEM = 64 MiB)
    tile_target = 2048
    try:
        info = pltpu.get_tpu_info()
        cap = getattr(info, "vmem_capacity_bytes", None)
        if cap is not None:
            if cap <= (64 << 20):   # v7x: small VMEM, very fast HBM -> big tiles
                vmem_limit = 48 << 20
                tile_target = 8192
            else:                   # v5e / v6e: 128 MiB physical VMEM
                vmem_limit = 100 << 20
                tile_target = 4096
    except Exception:
        pass
    return vmem_limit, tile_target


# ----------------------------- Pallas kernels ------------------------------ #

def matmul_stats_kernel(p_ref, w_ref, y_ref, stats_ref):
    """Pass 1: bf16 matmul on the MXU (f32 accumulate) in the transposed
    (channel-on-sublanes) formulation, plus per-tile partial BN statistics
    (sum, sum-of-squares) per channel."""
    # p_ref: (1, K_pad, tm) bf16, w_ref: (C_pad, K_pad) bf16
    y = jnp.dot(w_ref[...], p_ref[0], preferred_element_type=jnp.float32)  # (C_pad, tm)
    y_ref[...] = y[None]
    s = jnp.sum(y, axis=-1, keepdims=True)        # (C_pad, 1)
    sq = jnp.sum(y * y, axis=-1, keepdims=True)   # (C_pad, 1)
    stats_ref[...] = jnp.concatenate([s, sq], axis=-1)[None, None]  # (1,1,C_pad,2)


def norm_act_kernel(y_ref, scale_ref, shift_ref, o_ref):
    """Pass 2: folded BN affine (y*scale + shift) + LeakyReLU(0.2), f32 VPU.
    Output aliases the y buffer (same shape/dtype)."""
    y = y_ref[0]                                   # (C_pad, tm) f32
    yh = y * scale_ref[...] + shift_ref[...]       # (C_pad, 1) broadcast over lanes
    o_ref[...] = jnp.where(yh >= 0, yh, LEAKY_SLOPE * yh)[None].astype(o_ref.dtype)


# ------------------------------- Host wrapper ------------------------------ #

def im2col(x, kernel_size, stride, pad):
    """x: NCHW float32 -> bf16 patches [N, K, Ho*Wo] with K ordered
    (c_in, kh, kw) = PyTorch weight layout. Cast to bf16 up front so the
    stack/reshape/pad chain moves half the bytes."""
    # TODO(synk): for production-sized inputs, build the patch tile inside the
    # kernel from an NHWC block (strided slices) to avoid the ~k*k/stride^2
    # im2col HBM inflation.
    n, c, h, w = x.shape
    h_out = (h + 2 * pad - kernel_size) // stride + 1
    w_out = (w + 2 * pad - kernel_size) // stride + 1
    xp = jnp.pad(x.astype(jnp.bfloat16),
                 ((0, 0), (0, 0), (pad, pad), (pad, pad)))
    cols = []
    for ki in range(kernel_size):
        for kj in range(kernel_size):
            cols.append(xp[:, :,
                           ki:ki + stride * h_out:stride,
                           kj:kj + stride * w_out:stride])       # [N, C, Ho, Wo]
    patches = jnp.stack(cols, axis=2)                            # [N, C, k*k, Ho, Wo]
    patches = patches.reshape(n, c * kernel_size * kernel_size, h_out * w_out)
    return patches, (n, h_out, w_out)


@partial(jax.jit, static_argnames=("kernel_size", "stride", "pad"))
def conv_leaky_forward(x, weight, bias, gamma, beta, kernel_size, stride, pad):
    """x NCHW f32, weight [C_out, C_in, k, k] (PyTorch layout). Returns NCHW f32.
    groups=1 only."""
    # TODO(synk): grouped conv (groups > 1) not implemented in this kernel.
    del bias  # conv bias is exactly cancelled by train-mode BN mean subtraction.

    c_out = weight.shape[0]
    patches, (n, h_out, w_out) = im2col(x, kernel_size, stride, pad)
    _, k_dim, howo = patches.shape

    vmem_limit, tile_target = _tpu_params()

    # Padded problem sizes: channels -> sublane multiple of 8 (f32),
    # K -> bf16 sublane multiple of 16 (NOT 128), pixels -> lane tile multiple.
    c_pad = _round_up(c_out, 8)
    k_pad = _round_up(k_dim, 16)

    grid_m = max(1, _cdiv(howo, tile_target))
    if n * grid_m < 2 and _round_up(howo, LANES) >= 2 * LANES:
        grid_m = 2  # make sure both v7x TensorCores get work
    tm = _round_up(_cdiv(howo, grid_m), LANES)
    howo_pad = tm * grid_m

    # Zero-padded bf16 MXU operands (zeros contribute 0 to matmul and stats).
    patches_p = jnp.pad(patches,
                        ((0, 0), (0, k_pad - k_dim), (0, howo_pad - howo)))
    w_mat = weight.reshape(c_out, k_dim).astype(jnp.bfloat16)     # [C_out, K]
    w_p = jnp.pad(w_mat, ((0, c_pad - c_out), (0, k_pad - k_dim)))

    cparams = pltpu.CompilerParams(
        dimension_semantics=("parallel", "parallel"),
        vmem_limit_bytes=vmem_limit,
    )

    # ---- Pass 1: matmul (channel-major) + per-tile partial BN stats ---------
    y_flat, stats_part = pl.pallas_call(
        matmul_stats_kernel,
        out_shape=(
            jax.ShapeDtypeStruct((n, c_pad, howo_pad), jnp.float32),
            jax.ShapeDtypeStruct((n, grid_m, c_pad, 2), jnp.float32),
        ),
        grid=(n, grid_m),
        in_specs=[
            pl.BlockSpec((1, k_pad, tm), lambda b, m: (b, 0, m)),
            pl.BlockSpec((c_pad, k_pad), lambda b, m: (0, 0)),
        ],
        out_specs=(
            pl.BlockSpec((1, c_pad, tm), lambda b, m: (b, 0, m)),
            pl.BlockSpec((1, 1, c_pad, 2), lambda b, m: (b, m, 0, 0)),
        ),
        compiler_params=cparams,
    )(patches_p, w_p)

    # Tiny cross-tile reduction + fold of the BN affine into (scale, shift).
    stats = jnp.sum(stats_part, axis=(0, 1))                      # (C_pad, 2)
    m_f = jnp.float32(n * h_out * w_out)
    mean = stats[:, 0] / m_f
    var = stats[:, 1] / m_f - mean * mean                         # biased batch var
    gamma_p = jnp.pad(gamma.astype(jnp.float32), (0, c_pad - c_out))
    beta_p = jnp.pad(beta.astype(jnp.float32), (0, c_pad - c_out))
    scale = gamma_p * jax.lax.rsqrt(var + BN_EPS)
    shift = beta_p - mean * scale
    scale_col = scale.reshape(c_pad, 1)
    shift_col = shift.reshape(c_pad, 1)

    # ---- Pass 2: normalize (folded affine) + LeakyReLU, in place ------------
    out_flat = pl.pallas_call(
        norm_act_kernel,
        out_shape=jax.ShapeDtypeStruct((n, c_pad, howo_pad), jnp.float32),
        grid=(n, grid_m),
        in_specs=[
            pl.BlockSpec((1, c_pad, tm), lambda b, m: (b, 0, m)),
            pl.BlockSpec((c_pad, 1), lambda b, m: (0, 0)),
            pl.BlockSpec((c_pad, 1), lambda b, m: (0, 0)),
        ],
        out_specs=pl.BlockSpec((1, c_pad, tm), lambda b, m: (b, 0, m)),
        input_output_aliases={0: 0},   # reuse y_flat's HBM buffer
        compiler_params=cparams,
    )(y_flat, scale_col, shift_col)

    # Already channel-major per batch: slice off padding and reshape (no transpose).
    out = out_flat[:, :c_out, :howo].reshape(n, c_out, h_out, w_out)
    return out


# ------------------------------ Reference (JAX) ---------------------------- #

def reference_forward(x, weight, bias, gamma, beta, stride, pad):
    y = jax.lax.conv_general_dilated(
        x, weight, window_strides=(stride, stride),
        padding=((pad, pad), (pad, pad)),
        dimension_numbers=("NCHW", "OIHW", "NCHW"))
    y = y + bias[None, :, None, None]
    mean = jnp.mean(y, axis=(0, 2, 3), keepdims=True)
    var = jnp.mean((y - mean) ** 2, axis=(0, 2, 3), keepdims=True)
    yh = (y - mean) * jax.lax.rsqrt(var + BN_EPS)
    yh = yh * gamma[None, :, None, None] + beta[None, :, None, None]
    return jnp.where(yh >= 0, yh, LEAKY_SLOPE * yh)


if __name__ == "__main__":
    # Small shapes consistent with the module (downsample=True path).
    N, C_in, H, W = 2, 4, 16, 16
    C_out, K = 8, 3
    pad = (K - 2) // 2 + 1   # = 1
    stride = 2

    key = jax.random.PRNGKey(0)
    k_x, k_w = jax.random.split(key)

    x = jax.random.normal(k_x, (N, C_in, H, W), dtype=jnp.float32)

    # Deterministic init mirroring _init_weights:
    #   conv.weight ~ N(0, sqrt(2/n)), n = k*k*out_channels; conv.bias = 0
    #   bn.weight = 1; bn.bias = 0
    n_fan = K * K * C_out
    weight = jax.random.normal(k_w, (C_out, C_in, K, K), dtype=jnp.float32) * math.sqrt(2.0 / n_fan)
    bias = jnp.zeros((C_out,), dtype=jnp.float32)
    gamma = jnp.ones((C_out,), dtype=jnp.float32)
    beta = jnp.zeros((C_out,), dtype=jnp.float32)

    out = conv_leaky_forward(x, weight, bias, gamma, beta, K, stride, pad)
    out = jax.block_until_ready(out)
    assert out.shape == (N, C_out, H // 2, W // 2), out.shape

    ref = jax.block_until_ready(
        reference_forward(x, weight, bias, gamma, beta, stride, pad))
    max_err = float(jnp.max(jnp.abs(out - ref)))
    assert max_err < 7.5e-2, f"max abs error {max_err}"

    print("KERNEL_OK")
</pallas_src>

<mosaic_0001>
module attributes {stable_mosaic.version = 11 : i64} {
  func.func @matmul_stats_kernel(%arg0: i32, %arg1: i32, %arg2: memref<1x48x128xbf16, #tpu.memory_space<vmem>>, %arg3: memref<8x48xbf16, #tpu.memory_space<vmem>>, %arg4: memref<1x8x128xf32, #tpu.memory_space<vmem>>, %arg5: memref<1x1x8x2xf32, #tpu.memory_space<vmem>>) attributes {dimension_semantics = [#tpu.dimension_semantics<parallel>, #tpu.dimension_semantics<parallel>], iteration_bounds = array<i64: 2, 1>, scalar_prefetch = 0 : i64, scratch_operands = 0 : i64, tpu.core_type = #tpu.core_type<tc>, window_params = [{transform_indices = @transform_0, window_bounds = array<i64: 1, 48, 128>}, {pipeline_mode = #tpu.pipeline_mode<synchronous>, transform_indices = @transform_1, window_bounds = array<i64: 8, 48>}, {transform_indices = @transform_2, window_bounds = array<i64: 1, 8, 128>}, {transform_indices = @transform_3, window_bounds = array<i64: 1, 1, 8, 2>}]} {
    %c0 = arith.constant 0 : index
    %c0_0 = arith.constant 0 : index
    %0 = vector.load %arg3[%c0, %c0_0] : memref<8x48xbf16, #tpu.memory_space<vmem>>, vector<8x48xbf16>
    %c0_1 = arith.constant 0 : index
    %c0_2 = arith.constant 0 : index
    %c0_3 = arith.constant 0 : index
    %1 = vector.load %arg2[%c0_1, %c0_2, %c0_3] : memref<1x48x128xbf16, #tpu.memory_space<vmem>>, vector<1x48x128xbf16>
    %2 = vector.shape_cast %1 : vector<1x48x128xbf16> to vector<48x128xbf16>
    %cst = arith.constant dense<0.000000e+00> : vector<8x128xf32>
    %3 = tpu.matmul %0, %2, %cst {dimension_numbers = #tpu.dot_dimension_numbers<[1], [0], [0], [1], [0, 0, 1, 1], [], []>} : vector<8x48xbf16>, vector<48x128xbf16>, vector<8x128xf32> -> vector<8x128xf32>
    %4 = vector.shape_cast %3 : vector<8x128xf32> to vector<1x8x128xf32>
    %c0_4 = arith.constant 0 : index
    %c0_5 = arith.constant 0 : index
    %c0_6 = arith.constant 0 : index
    %5 = vector.load %arg4[%c0_4, %c0_5, %c0_6] : memref<1x8x128xf32, #tpu.memory_space<vmem>>, vector<1x8x128xf32>
    tpu.vector_store %arg4[%c0_4, %c0_5, %c0_6], %4 {strides = array<i32>} : memref<1x8x128xf32, #tpu.memory_space<vmem>>, vector<1x8x128xf32>,
    %cst_7 = arith.constant dense<0.000000e+00> : vector<8xf32>
    %6 = vector.multi_reduction <add>, %3, %cst_7 [1] : vector<8x128xf32> to vector<8xf32>
    %7 = vector.shape_cast %6 : vector<8xf32> to vector<8x1xf32>
    %8 = arith.mulf %3, %3 : vector<8x128xf32>
    %cst_8 = arith.constant dense<0.000000e+00> : vector<8xf32>
    %9 = vector.multi_reduction <add>, %8, %cst_8 [1] : vector<8x128xf32> to vector<8xf32>
    %10 = vector.shape_cast %9 : vector<8xf32> to vector<8x1xf32>
    %11 = tpu.concatenate %7, %10 in 1 : vector<8x1xf32>, vector<8x1xf32> -> vector<8x2xf32>
    %12 = vector.shape_cast %11 : vector<8x2xf32> to vector<1x1x8x2xf32>
    %c0_9 = arith.constant 0 : index
    %c0_10 = arith.constant 0 : index
    %c0_11 = arith.constant 0 : index
    %c0_12 = arith.constant 0 : index
    %13 = vector.load %arg5[%c0_9, %c0_10, %c0_11, %c0_12] : memref<1x1x8x2xf32, #tpu.memory_space<vmem>>, vector<1x1x8x2xf32>
    tpu.vector_store %arg5[%c0_9, %c0_10, %c0_11, %c0_12], %12 {strides = array<i32>} : memref<1x1x8x2xf32, #tpu.memory_space<vmem>>, vector<1x1x8x2xf32>,
    return
  }
  func.func @transform_0(%arg0: i32, %arg1: i32) -> (i32, i32, i32) {
    %c0_i32 = arith.constant 0 : i32
    %c0_i32_0 = arith.constant 0 : i32
    return %arg0, %c0_i32, %arg1 : i32, i32, i32
  }
  func.func @transform_1(%arg0: i32, %arg1: i32) -> (i32, i32) {
    %c0_i32 = arith.constant 0 : i32
    %c0_i32_0 = arith.constant 0 : i32
    %c0_i32_1 = arith.constant 0 : i32
    return %c0_i32, %c0_i32_0 : i32, i32
  }
  func.func @transform_2(%arg0: i32, %arg1: i32) -> (i32, i32, i32) {
    %c0_i32 = arith.constant 0 : i32
    %c0_i32_0 = arith.constant 0 : i32
    return %arg0, %c0_i32, %arg1 : i32, i32, i32
  }
  func.func @transform_3(%arg0: i32, %arg1: i32) -> (i32, i32, i32, i32) {
    %c0_i32 = arith.constant 0 : i32
    %c0_i32_0 = arith.constant 0 : i32
    %c0_i32_1 = arith.constant 0 : i32
    return %arg0, %arg1, %c0_i32, %c0_i32_0 : i32, i32, i32, i32
  }
}

module attributes {stable_mosaic.version = 11 : i64} {
  func.func @norm_act_kernel(%arg0: i32, %arg1: i32, %arg2: memref<1x8x128xf32, #tpu.memory_space<vmem>>, %arg3: memref<8x1xf32, #tpu.memory_space<vmem>>, %arg4: memref<8x1xf32, #tpu.memory_space<vmem>>, %arg5: memref<1x8x128xf32, #tpu.memory_space<vmem>>) attributes {dimension_semantics = [#tpu.dimension_semantics<parallel>, #tpu.dimension_semantics<parallel>], iteration_bounds = array<i64: 2, 1>, scalar_prefetch = 0 : i64, scratch_operands = 0 : i64, tpu.core_type = #tpu.core_type<tc>, window_params = [{transform_indices = @transform_0, window_bounds = array<i64: 1, 8, 128>}, {pipeline_mode = #tpu.pipeline_mode<synchronous>, transform_indices = @transform_1, window_bounds = array<i64: 8, 1>}, {pipeline_mode = #tpu.pipeline_mode<synchronous>, transform_indices = @transform_2, window_bounds = array<i64: 8, 1>}, {transform_indices = @transform_3, window_bounds = array<i64: 1, 8, 128>}]} {
    %c0 = arith.constant 0 : index
    %c0_0 = arith.constant 0 : index
    %c0_1 = arith.constant 0 : index
    %0 = vector.load %arg2[%c0, %c0_0, %c0_1] : memref<1x8x128xf32, #tpu.memory_space<vmem>>, vector<1x8x128xf32>
    %1 = vector.shape_cast %0 : vector<1x8x128xf32> to vector<8x128xf32>
    %c0_2 = arith.constant 0 : index
    %c0_3 = arith.constant 0 : index
    %2 = vector.load %arg3[%c0_2, %c0_3] : memref<8x1xf32, #tpu.memory_space<vmem>>, vector<8x1xf32>
    %3 = vector.broadcast %2 : vector<8x1xf32> to vector<8x128xf32>
    %4 = arith.mulf %1, %3 : vector<8x128xf32>
    %c0_4 = arith.constant 0 : index
    %c0_5 = arith.constant 0 : index
    %5 = vector.load %arg4[%c0_4, %c0_5] : memref<8x1xf32, #tpu.memory_space<vmem>>, vector<8x1xf32>
    %6 = vector.broadcast %5 : vector<8x1xf32> to vector<8x128xf32>
    %7 = arith.addf %4, %6 : vector<8x128xf32>
    %cst = arith.constant 0.000000e+00 : f32
    %8 = vector.broadcast %cst : f32 to vector<8x128xf32>
    %9 = arith.cmpf oge, %7, %8 : vector<8x128xf32>
    %cst_6 = arith.constant 2.000000e-01 : f32
    %10 = vector.broadcast %cst_6 : f32 to vector<8x128xf32>
    %11 = arith.mulf %10, %7 : vector<8x128xf32>
    %12 = arith.select %9, %7, %11 : vector<8x128xi1>, vector<8x128xf32>
    %13 = vector.shape_cast %12 : vector<8x128xf32> to vector<1x8x128xf32>
    %c0_7 = arith.constant 0 : index
    %c0_8 = arith.constant 0 : index
    %c0_9 = arith.constant 0 : index
    %14 = vector.load %arg5[%c0_7, %c0_8, %c0_9] : memref<1x8x128xf32, #tpu.memory_space<vmem>>, vector<1x8x128xf32>
    tpu.vector_store %arg5[%c0_7, %c0_8, %c0_9], %13 {strides = array<i32>} : memref<1x8x128xf32, #tpu.memory_space<vmem>>, vector<1x8x128xf32>,
    return
  }
  func.func @transform_0(%arg0: i32, %arg1: i32) -> (i32, i32, i32) {
    %c0_i32 = arith.constant 0 : i32
    %c0_i32_0 = arith.constant 0 : i32
    return %arg0, %c0_i32, %arg1 : i32, i32, i32
  }
  func.func @transform_1(%arg0: i32, %arg1: i32) -> (i32, i32) {
    %c0_i32 = arith.constant 0 : i32
    %c0_i32_0 = arith.constant 0 : i32
    %c0_i32_1 = arith.constant 0 : i32
    return %c0_i32, %c0_i32_0 : i32, i32
  }
  func.func @transform_2(%arg0: i32, %arg1: i32) -> (i32, i32) {
    %c0_i32 = arith.constant 0 : i32
    %c0_i32_0 = arith.constant 0 : i32
    %c0_i32_1 = arith.constant 0 : i32
    return %c0_i32, %c0_i32_0 : i32, i32
  }
  func.func @transform_3(%arg0: i32, %arg1: i32) -> (i32, i32, i32) {
    %c0_i32 = arith.constant 0 : i32
    %c0_i32_0 = arith.constant 0 : i32
    return %arg0, %c0_i32, %arg1 : i32, i32, i32
  }
}

</mosaic_0001>

<llo_original>
// kernel: conv_leaky_forward.2
$region0: #{conv_leaky_forward.2}
  #allocation0 [shape = 'u32[]', space=smem, size = 0x4, offset = 0x4, fixed_abs, tag = 'smem constant byte address 0x4 - core index']
  #allocation1 [shape = 'u32[144,128]{1,0:T(1,128)}', space=vmem, size = 0x12000, scoped, tag = 'internal scratch']
  %s0 = inlined_call_operand.vmem [shape: bf16[2,48,128], index: 0, kind: input, shape index: {}]
  %s1 = inlined_call_operand.vmem [shape: bf16[8,48], index: 1, kind: input, shape index: {}]
  %s2 = inlined_call_operand.vmem [shape: f32[2,8,128], index: 2, kind: output, shape index: {0}]
  %s3 = inlined_call_operand.vmem [shape: f32[2,1,8,2], index: 3, kind: output, shape index: {1}]
  %4 = xla_tuple %s2, %s3
  %s5 = sld [smem:[#allocation0]]
  $region49: #{conv_leaky_forward.2} parent=0
    _
  %s7 = ssub.s32 1, %s5
  %s8 = scalar_select 0, %s7, %s5
  loop: start=0, step=1, limit=4
  $region2: #{conv_leaky_forward.2} parent=0 // loop_pre_header
    _
  $region3: #{conv_leaky_forward.2} parent=0 // loop_header
    %s10 = sphi 0, %s14
    %p11 = scmp.ge.s32.totalorder %s10, 4
    %s17 = sphi 0, %s29
    %s18 = sphi 0, %s25
    %s19 = sphi 0, %s17
    %s20 = sphi 0, %s18
    %s21 = sphi 0, %s19
    %s22 = sphi 0, %s20
    %s34 = sphi 0, %s36
    %s37 = sphi 0, %s34
    %s38 = sphi 0, %s37
    %s54 = sphi 0, %s38
    %s58 = sphi 0, %s58
    %s60 = sphi 0, %s58
    %s61 = sphi 0, %s60
    %s75 = sphi 0, %s61
    %s83 = sphi 0, %s85
    %s86 = sphi 0, %s83
    %s87 = sphi 0, %s86
    %s103 = sphi 0, %s87
    %s111 = sphi 0, %s113
    %s114 = sphi 0, %s111
    %s115 = sphi 0, %s114
    %s131 = sphi 0, %s115
  $region4: #{conv_leaky_forward.2} parent=0 // loop_header_branch
    %13 = sbr.rel (%p11) target = $region8
  $region5: #{conv_leaky_forward.2} parent=0 // loop_body
    %s15 = ssub.s32 %s10, 1
    %s16 = ssub.s32 %s10, 2
    %s23 = sadd.s32 1, %s18
    %p24 = scmp.ge.s32.totalorder %s23, 1
    %s25 = scalar_select %p24, 0, %s23
    %s26 = sadd.s32 1, %s17
    %s27 = scalar_select %p24, %s26, %s17
    %p28 = scmp.ge.s32.totalorder %s27, 2
    %s29 = scalar_select %p28, 0, %s27
    %s30 = ssub.s32 %s17, %s29
    %s31 = ssub.s32 %s18, %s25
    %s32 = sor.u32 %s30, %s31
    %p33 = scmp.eq.s32.totalorder %s32, 0
    %s35 = sadd.s32 %s34, 1
    %s36 = scalar_select %p33, %s34, %s35
    %p39 = pneg %p33
    %p40 = scmp.eq.s32.totalorder %s10, 1
    %p41 = por %p39, %p40
    %p42 = scmp.ne.s32.totalorder %s34, %s37
    %p43 = scmp.eq.s32.totalorder %s10, 0
    %p44 = por %p42, %p43
    %p45 = scmp.ne.s32.totalorder %s34, %s37
    %p46 = scmp.eq.s32.totalorder %s15, 1
    %p47 = por %p45, %p46
    %p48 = scmp.ne.s32.totalorder %s37, %s38
    %p49 = scmp.eq.s32.totalorder %s15, 0
    %p50 = por %p48, %p49
    %p51 = scmp.ne.s32.totalorder %s37, %s38
    %p52 = scmp.eq.s32.totalorder %s16, 1
    %p53 = por %p51, %p52
    %p55 = scmp.ne.s32.totalorder %s38, %s54
    %p56 = scmp.eq.s32.totalorder %s16, 0
    %p57 = por %p55, %p56
    %s59 = sadd.s32 %s58, 1
    %p62 = scmp.eq.s32.totalorder %s10, 1
    %p63 = scmp.ne.s32.totalorder %s58, %s60
    %p64 = scmp.eq.s32.totalorder %s10, 0
    %p65 = por %p63, %p64
    %p66 = scmp.ne.s32.totalorder %s58, %s60
    %p67 = scmp.eq.s32.totalorder %s15, 1
    %p68 = por %p66, %p67
    %p69 = scmp.ne.s32.totalorder %s60, %s61
    %p70 = scmp.eq.s32.totalorder %s15, 0
    %p71 = por %p69, %p70
    %p72 = scmp.ne.s32.totalorder %s60, %s61
    %p73 = scmp.eq.s32.totalorder %s16, 1
    %p74 = por %p72, %p73
    %p76 = scmp.ne.s32.totalorder %s61, %s75
    %p77 = scmp.eq.s32.totalorder %s16, 0
    %p78 = por %p76, %p77
    %s79 = ssub.s32 %s17, %s29
    %s80 = ssub.s32 %s18, %s25
    %s81 = sor.u32 %s79, %s80
    %p82 = scmp.eq.s32.totalorder %s81, 0
    %s84 = sadd.s32 %s83, 1
    %s85 = scalar_select %p82, %s83, %s84
    %p88 = pneg %p82
    %p89 = scmp.eq.s32.totalorder %s10, 1
    %p90 = por %p88, %p89
    %p91 = scmp.ne.s32.totalorder %s83, %s86
    %p92 = scmp.eq.s32.totalorder %s10, 0
    %p93 = por %p91, %p92
    %p94 = scmp.ne.s32.totalorder %s83, %s86
    %p95 = scmp.eq.s32.totalorder %s15, 1
    %p96 = por %p94, %p95
    %p97 = scmp.ne.s32.totalorder %s86, %s87
    %p98 = scmp.eq.s32.totalorder %s15, 0
    %p99 = por %p97, %p98
    %p100 = scmp.ne.s32.totalorder %s86, %s87
    %p101 = scmp.eq.s32.totalorder %s16, 1
    %p102 = por %p100, %p101
    %p104 = scmp.ne.s32.totalorder %s87, %s103
    %p105 = scmp.eq.s32.totalorder %s16, 0
    %p106 = por %p104, %p105
    %s107 = ssub.s32 %s17, %s29
    %s108 = ssub.s32 %s18, %s25
    %s109 = sor.u32 %s107, %s108
    %p110 = scmp.eq.s32.totalorder %s109, 0
    %s112 = sadd.s32 %s111, 1
    %s113 = scalar_select %p110, %s111, %s112
    %p116 = pneg %p110
    %p117 = scmp.eq.s32.totalorder %s10, 1
    %p118 = por %p116, %p117
    %p119 = scmp.ne.s32.totalorder %s111, %s114
    %p120 = scmp.eq.s32.totalorder %s10, 0
    %p121 = por %p119, %p120
    %p122 = scmp.ne.s32.totalorder %s111, %s114
    %p123 = scmp.eq.s32.totalorder %s15, 1
    %p124 = por %p122, %p123
    %p125 = scmp.ne.s32.totalorder %s114, %s115
    %p126 = scmp.eq.s32.totalorder %s15, 0
    %p127 = por %p125, %p126
    %p128 = scmp.ne.s32.totalorder %s114, %s115
    %p129 = scmp.eq.s32.totalorder %s16, 1
    %p130 = por %p128, %p129
    %p132 = scmp.ne.s32.totalorder %s115, %s131
    %p133 = scmp.eq.s32.totalorder %s16, 0
    %p134 = por %p132, %p133
    %p135 = scmp.le.s32.totalorder 1, %s10
    %p136 = scmp.lt.s32.totalorder %s10, 3
    %p137 = pnand %p135, %p136
    %p138 = pneg %p137
    // Predicated region
    $region9: #{conv_leaky_forward.2} parent=5 // pred_check
      _
    $region10: #{conv_leaky_forward.2} parent=5 // pred_check_branch
      %140 = sbr.rel (%p137) target = $region12
    $region11: #{conv_leaky_forward.2} parent=5 // pred_region
      %s141 = ssub.s32 %s10, 1
      // Predicated region
      $region13: #{conv_leaky_forward.2} parent=11 // pred_check
        %p142 = pneg %p71
      $region14: #{conv_leaky_forward.2} parent=11 // pred_check_branch
        %144 = sbr.rel (%p142) target = $region16
      $region15: #{conv_leaky_forward.2} parent=11 // pred_region
        _
      $region16: #{conv_leaky_forward.2} parent=11 // pred_fallthru
        _
    $region12: #{conv_leaky_forward.2} parent=5 // pred_fallthru
      _
    %p145 = scmp.lt.s32.totalorder %s10, 2
    // Predicated region
    $region17: #{conv_leaky_forward.2} parent=5 // pred_check
      %p146 = pneg %p145
    $region18: #{conv_leaky_forward.2} parent=5 // pred_check_branch
      %148 = sbr.rel (%p146) target = $region20
    $region19: #{conv_leaky_forward.2} parent=5 // pred_region
      // Predicated region
      $region21: #{conv_leaky_forward.2} parent=19 // pred_check
        %p149 = pneg %p44
      $region22: #{conv_leaky_forward.2} parent=19 // pred_check_branch
        %151 = sbr.rel (%p149) target = $region24
      $region23: #{conv_leaky_forward.2} parent=19 // pred_region
        %p152 = scmp.lt.s32.totalorder %s17, 1
        %s153 = scalar_select %p152, %s17, 1
        %p154 = scmp.lt.s32.totalorder %s18, 0
        %s155 = scalar_select %p154, %s18, 0
        %s156 = smul.addr %s153, 6
        %s157 = sadd.s32 %s155, %s156
        %s158 = smul.addr %s157, 4
        %s159 = scalar_lea.vmem %s0, %s158
      $region24: #{conv_leaky_forward.2} parent=19 // pred_fallthru
        _
    $region20: #{conv_leaky_forward.2} parent=5 // pred_fallthru
      _
    %p160 = scmp.le.s32.totalorder 1, %s10
    %p161 = scmp.lt.s32.totalorder %s10, 3
    %p162 = pnand %p160, %p161
    %p163 = pneg %p162
    // Predicated region
    $region25: #{conv_leaky_forward.2} parent=5 // pred_check
      _
    $region26: #{conv_leaky_forward.2} parent=5 // pred_check_branch
      %165 = sbr.rel (%p162) target = $region28
    $region27: #{conv_leaky_forward.2} parent=5 // pred_region
      %s166 = ssub.s32 %s10, 1
      %p167 = scmp.lt.s32.totalorder %s19, 1
      %s168 = scalar_select %p167, %s19, 1
      %p169 = scmp.lt.s32.totalorder %s20, 0
      %s170 = scalar_select %p169, %s20, 0
      %s171 = smul.addr %s168, 6
      %s172 = sadd.s32 %s170, %s171
      %s173 = smul.addr %s172, 4
      %s174 = scalar_lea.vmem %s0, %s173
      %p175 = pneg %p50
      %p176 = pneg %p47
      %p177 = pneg %p71
      %p178 = pneg %p68
      %p179 = pneg %p99
      %p180 = pneg %p96
      %p181 = scmp.lt.s32.totalorder %s19, 1
      %s182 = scalar_select %p181, %s19, 1
      %p183 = scmp.lt.s32.totalorder %s20, 0
      %s184 = scalar_select %p183, %s20, 0
      %s185 = sadd.s32 %s184, %s182
      %s186 = smul.addr %s185, 8
      %s187 = scalar_lea.vmem %s2, %s186
      %p188 = pneg %p127
      %p189 = pneg %p124
      %p190 = scmp.lt.s32.totalorder %s19, 1
      %s191 = scalar_select %p190, %s19, 1
      %p192 = scmp.lt.s32.totalorder %s20, 0
      %s193 = scalar_select %p192, %s20, 0
      %s194 = sadd.s32 %s193, %s191
      %s195 = smul.addr %s194, 8
      %s196 = scalar_lea.vmem %s3, %s195
      %p197 = scmp.lt.s32.totalorder %s19, 1
      %s198 = scalar_select %p197, %s19, 1
      %p199 = scmp.lt.s32.totalorder %s20, 0
      %s200 = scalar_select %p199, %s20, 0
      %s201 = smul.addr %s198, 6
      %s202 = sadd.s32 %s200, %s201
      %s203 = smul.addr %s202, 4
      %s204 = scalar_lea.vmem %s0, %s203
      %p205 = scmp.lt.s32.totalorder %s19, 1
      %s206 = scalar_select %p205, %s19, 1
      %p207 = scmp.lt.s32.totalorder %s20, 0
      %s208 = scalar_select %p207, %s20, 0
      %s209 = sadd.s32 %s208, %s206
      %s210 = smul.addr %s209, 8
      %s211 = scalar_lea.vmem %s2, %s210
      %p212 = scmp.lt.s32.totalorder %s19, 1
      %s213 = scalar_select %p212, %s19, 1
      %p214 = scmp.lt.s32.totalorder %s20, 0
      %s215 = scalar_select %p214, %s20, 0
      %s216 = sadd.s32 %s215, %s213
      %s217 = smul.addr %s216, 8
      %s218 = scalar_lea.vmem %s3, %s217
      %v220 = vld [vmem:[%s1] sm:$0xf]
      %v221 = vld [vmem:[%s204] sm:$0xf]
      %v222 = vld [vmem:[%s204 + $0x4] sm:$0xf]
      %v223 = vld [vmem:[%s204 + $0x8] sm:$0xf]
      %v224 = vld [vmem:[%s204 + $0xc] sm:$0xf]
      %v225 = vld [vmem:[%s204 + $0x10] sm:$0xf]
      %v226 = vld [vmem:[%s204 + $0x14] sm:$0xf]
      %v233 = vunpack.c.l.b16 %v221
      %v234 = vunpack.c.l.b16 %v222
      %v235 = vunpack.c.l.b16 %v223
      %v236 = vunpack.c.l.b16 %v224
      %v237 = vunpack.c.l.b16 %v225
      %v238 = vunpack.c.l.b16 %v226
      %v239 = vpack.c.b16 %v234, %v233
      %v240 = vpack.c.b16 %v236, %v235
      %v241 = vpack.c.b16 %v238, %v237
      %vm245 = vcmask 392192
      %v247 = vsel %vm245, %v220, 0
      %249 = vmatprep.subr.bf16.mxu0 0
      %250 = vmatpush1.bf16.msra.mxu0 %v239
      %251 = vmatprep.subr.bf16.mxu0 0
      %252 = vmatpush1.bf16.msra.mxu0 %v240
      %253 = vmatprep.subr.bf16.mxu0 0
      %254 = vmatpush1.bf16.msra.mxu0 %v241
      %255 = vmatprep.subr.bf16.mxu0 0
      %256 = vmatpush1.bf16.msra.mxu0 0
      %257 = vmatprep.subr.bf16.mxu0 0
      %258 = vmatpush1.bf16.msra.mxu0 0
      %259 = vmatprep.subr.bf16.mxu0 0
      %260 = vmatpush1.bf16.msra.mxu0 0
      %261 = vmatprep.subr.bf16.mxu0 0
      %262 = vmatpush1.bf16.msra.mxu0 0
      %263 = vmatprep.subr.bf16.mxu0 0
      %264 = vmatpush1.bf16.msra.mxu0 0
      %265 = vmatprep.subr.bf16.mxu0 0
      %266 = vmatpush1.bf16.msra.mxu0 0
      %267 = vmatprep.subr.bf16.mxu0 0
      %268 = vmatpush1.bf16.msra.mxu0 0
      %269 = vmatprep.subr.bf16.mxu0 0
      %270 = vmatpush1.bf16.msra.mxu0 0
      %271 = vmatprep.subr.bf16.mxu0 0
      %272 = vmatpush1.bf16.msra.mxu0 0
      %273 = vmatprep.subr.bf16.mxu0 0
      %274 = vmatpush1.bf16.msra.mxu0 0
      %275 = vmatprep.subr.bf16.mxu0 0
      %276 = vmatpush1.bf16.msra.mxu0 0
      %277 = vmatprep.subr.bf16.mxu0 0
      %278 = vmatpush1.bf16.msra.mxu0 0
      %279 = vmatprep.subr.bf16.mxu0 0
      %280 = vmatpush1.bf16.msra.mxu0 0
      %281 = vmatprep.mubr.bf16.mxu0 0
      %282 = vmatmul.mubr.bf16.gmra.mrb[0].mxu0 %v247
      %v283 = vpop.f32.mrb[0].mxu0
      %v284 = vadd.f32 0.0, %v283
      %v285 = vpop.f32.mrb[0].mxu0
      %v286 = vpop.f32.mrb[0].mxu0
      %v287 = vpop.f32.mrb[0].mxu0
      %288 = vdwg.mxu0
      %289 = vst [vmem:[%s211] sm:$0xff] %v284
      %290 = vadd.xlane.f32.xlu0 %v284
      %v291 = vpop.xlane.xlu0 %290
      %v292 = vmul.f32 %v284, %v284
      %293 = vadd.xlane.f32.xlu0 %v292
      %v294 = vpop.xlane.xlu0 %293
      %vm295 = vcmask 7168
      %v296 = vsel %vm295, %v291, %v294
      %vm297 = vcmask 15360
      %298 = vst.msk [vmem:[%s218] sm:$0xff] %vm297, %v296
      %p299 = scmp.lt.s32.totalorder %s19, 1
      %s300 = scalar_select %p299, %s19, 1
      %p301 = scmp.lt.s32.totalorder %s20, 0
      %s302 = scalar_select %p301, %s20, 0
      %s303 = sadd.s32 %s302, %s300
      %s304 = smul.addr %s303, 8
      %s305 = scalar_lea.vmem %s2, %s304
      %p306 = scmp.lt.s32.totalorder %s19, 1
      %s307 = scalar_select %p306, %s19, 1
      %p308 = scmp.lt.s32.totalorder %s20, 0
      %s309 = scalar_select %p308, %s20, 0
      %s310 = sadd.s32 %s309, %s307
      %s311 = smul.addr %s310, 8
      %s312 = scalar_lea.vmem %s3, %s311
      // Predicated region
      $region29: #{conv_leaky_forward.2} parent=27 // pred_check
        %p313 = pneg %p96
      $region30: #{conv_leaky_forward.2} parent=27 // pred_check_branch
        %315 = sbr.rel (%p313) target = $region32
      $region31: #{conv_leaky_forward.2} parent=27 // pred_region
        _
      $region32: #{conv_leaky_forward.2} parent=27 // pred_fallthru
        _
      // Predicated region
      $region33: #{conv_leaky_forward.2} parent=27 // pred_check
        %p316 = pneg %p124
      $region34: #{conv_leaky_forward.2} parent=27 // pred_check_branch
        %318 = sbr.rel (%p316) target = $region36
      $region35: #{conv_leaky_forward.2} parent=27 // pred_region
        _
      $region36: #{conv_leaky_forward.2} parent=27 // pred_fallthru
        _
    $region28: #{conv_leaky_forward.2} parent=5 // pred_fallthru
      _
    %p319 = scmp.le.s32.totalorder 2, %s10
    // Predicated region
    $region37: #{conv_leaky_forward.2} parent=5 // pred_check
      %p320 = pneg %p319
    $region38: #{conv_leaky_forward.2} parent=5 // pred_check_branch
      %322 = sbr.rel (%p320) target = $region40
    $region39: #{conv_leaky_forward.2} parent=5 // pred_region
      %s323 = ssub.s32 %s10, 2
      // Predicated region
      $region41: #{conv_leaky_forward.2} parent=39 // pred_check
        %p324 = pneg %p102
      $region42: #{conv_leaky_forward.2} parent=39 // pred_check_branch
        %326 = sbr.rel (%p324) target = $region44
      $region43: #{conv_leaky_forward.2} parent=39 // pred_region
        %p327 = scmp.lt.s32.totalorder %s21, 1
        %s328 = scalar_select %p327, %s21, 1
        %p329 = scmp.lt.s32.totalorder %s22, 0
        %s330 = scalar_select %p329, %s22, 0
        %s331 = sadd.s32 %s330, %s328
        %s332 = smul.addr %s331, 8
        %s333 = scalar_lea.vmem %s2, %s332
      $region44: #{conv_leaky_forward.2} parent=39 // pred_fallthru
        _
      // Predicated region
      $region45: #{conv_leaky_forward.2} parent=39 // pred_check
        %p334 = pneg %p130
      $region46: #{conv_leaky_forward.2} parent=39 // pred_check_branch
        %336 = sbr.rel (%p334) target = $region48
      $region47: #{conv_leaky_forward.2} parent=39 // pred_region
        %p337 = scmp.lt.s32.totalorder %s21, 1
        %s338 = scalar_select %p337, %s21, 1
        %p339 = scmp.lt.s32.totalorder %s22, 0
        %s340 = scalar_select %p339, %s22, 0
        %s341 = sadd.s32 %s340, %s338
        %s342 = smul.addr %s341, 8
        %s343 = scalar_lea.vmem %s3, %s342
      $region48: #{conv_leaky_forward.2} parent=39 // pred_fallthru
        _
    $region40: #{conv_leaky_forward.2} parent=5 // pred_fallthru
      _
  $region6: #{conv_leaky_forward.2} parent=0 // loop_footer
    %s14 = sadd.s32 1, %s10
  $region7: #{conv_leaky_forward.2} parent=0 // loop_footer_branch
    %9 = sbr.rel target = $region3
  $region8: #{conv_leaky_forward.2} parent=0 // loop_exit
    _

// kernel: conv_leaky_forward.3
$region0: #{conv_leaky_forward.3}
  #allocation0 [shape = 'u32[]', space=smem, size = 0x4, offset = 0x4, fixed_abs, tag = 'smem constant byte address 0x4 - core index']
  #allocation1 [shape = 'u32[144,128]{1,0:T(1,128)}', space=vmem, size = 0x12000, scoped, tag = 'internal scratch']
  %s0 = inlined_call_operand.vmem [shape: f32[2,8,128], index: 0, kind: input, shape index: {}, may-alias: {0,3}]
  %s1 = inlined_call_operand.vmem [shape: f32[8,1], index: 1, kind: input, shape index: {}]
  %s2 = inlined_call_operand.vmem [shape: f32[8,1], index: 2, kind: input, shape index: {}]
  %s3 = inlined_call_operand.vmem [shape: f32[2,8,128], index: 3, kind: output, shape index: {}, may-alias: {0,3}]
  %s4 = sld [smem:[#allocation0]]
  $region45: #{conv_leaky_forward.3} parent=0
    _
  %s6 = ssub.s32 1, %s4
  %s7 = scalar_select 0, %s6, %s4
  loop: start=0, step=1, limit=4
  $region2: #{conv_leaky_forward.3} parent=0 // loop_pre_header
    _
  $region3: #{conv_leaky_forward.3} parent=0 // loop_header
    %s9 = sphi 0, %s13
    %p10 = scmp.ge.s32.totalorder %s9, 4
    %s16 = sphi 0, %s28
    %s17 = sphi 0, %s24
    %s18 = sphi 0, %s16
    %s19 = sphi 0, %s17
    %s20 = sphi 0, %s18
    %s21 = sphi 0, %s19
    %s33 = sphi 0, %s35
    %s36 = sphi 0, %s33
    %s37 = sphi 0, %s36
    %s53 = sphi 0, %s37
    %s57 = sphi 0, %s57
    %s59 = sphi 0, %s57
    %s60 = sphi 0, %s59
    %s74 = sphi 0, %s60
    %s78 = sphi 0, %s78
    %s80 = sphi 0, %s78
    %s81 = sphi 0, %s80
    %s95 = sphi 0, %s81
    %s103 = sphi 0, %s105
    %s106 = sphi 0, %s103
    %s107 = sphi 0, %s106
    %s123 = sphi 0, %s107
  $region4: #{conv_leaky_forward.3} parent=0 // loop_header_branch
    %12 = sbr.rel (%p10) target = $region8
  $region5: #{conv_leaky_forward.3} parent=0 // loop_body
    %s14 = ssub.s32 %s9, 1
    %s15 = ssub.s32 %s9, 2
    %s22 = sadd.s32 1, %s17
    %p23 = scmp.ge.s32.totalorder %s22, 1
    %s24 = scalar_select %p23, 0, %s22
    %s25 = sadd.s32 1, %s16
    %s26 = scalar_select %p23, %s25, %s16
    %p27 = scmp.ge.s32.totalorder %s26, 2
    %s28 = scalar_select %p27, 0, %s26
    %s29 = ssub.s32 %s16, %s28
    %s30 = ssub.s32 %s17, %s24
    %s31 = sor.u32 %s29, %s30
    %p32 = scmp.eq.s32.totalorder %s31, 0
    %s34 = sadd.s32 %s33, 1
    %s35 = scalar_select %p32, %s33, %s34
    %p38 = pneg %p32
    %p39 = scmp.eq.s32.totalorder %s9, 1
    %p40 = por %p38, %p39
    %p41 = scmp.ne.s32.totalorder %s33, %s36
    %p42 = scmp.eq.s32.totalorder %s9, 0
    %p43 = por %p41, %p42
    %p44 = scmp.ne.s32.totalorder %s33, %s36
    %p45 = scmp.eq.s32.totalorder %s14, 1
    %p46 = por %p44, %p45
    %p47 = scmp.ne.s32.totalorder %s36, %s37
    %p48 = scmp.eq.s32.totalorder %s14, 0
    %p49 = por %p47, %p48
    %p50 = scmp.ne.s32.totalorder %s36, %s37
    %p51 = scmp.eq.s32.totalorder %s15, 1
    %p52 = por %p50, %p51
    %p54 = scmp.ne.s32.totalorder %s37, %s53
    %p55 = scmp.eq.s32.totalorder %s15, 0
    %p56 = por %p54, %p55
    %s58 = sadd.s32 %s57, 1
    %p61 = scmp.eq.s32.totalorder %s9, 1
    %p62 = scmp.ne.s32.totalorder %s57, %s59
    %p63 = scmp.eq.s32.totalorder %s9, 0
    %p64 = por %p62, %p63
    %p65 = scmp.ne.s32.totalorder %s57, %s59
    %p66 = scmp.eq.s32.totalorder %s14, 1
    %p67 = por %p65, %p66
    %p68 = scmp.ne.s32.totalorder %s59, %s60
    %p69 = scmp.eq.s32.totalorder %s14, 0
    %p70 = por %p68, %p69
    %p71 = scmp.ne.s32.totalorder %s59, %s60
    %p72 = scmp.eq.s32.totalorder %s15, 1
    %p73 = por %p71, %p72
    %p75 = scmp.ne.s32.totalorder %s60, %s74
    %p76 = scmp.eq.s32.totalorder %s15, 0
    %p77 = por %p75, %p76
    %s79 = sadd.s32 %s78, 1
    %p82 = scmp.eq.s32.totalorder %s9, 1
    %p83 = scmp.ne.s32.totalorder %s78, %s80
    %p84 = scmp.eq.s32.totalorder %s9, 0
    %p85 = por %p83, %p84
    %p86 = scmp.ne.s32.totalorder %s78, %s80
    %p87 = scmp.eq.s32.totalorder %s14, 1
    %p88 = por %p86, %p87
    %p89 = scmp.ne.s32.totalorder %s80, %s81
    %p90 = scmp.eq.s32.totalorder %s14, 0
    %p91 = por %p89, %p90
    %p92 = scmp.ne.s32.totalorder %s80, %s81
    %p93 = scmp.eq.s32.totalorder %s15, 1
    %p94 = por %p92, %p93
    %p96 = scmp.ne.s32.totalorder %s81, %s95
    %p97 = scmp.eq.s32.totalorder %s15, 0
    %p98 = por %p96, %p97
    %s99 = ssub.s32 %s16, %s28
    %s100 = ssub.s32 %s17, %s24
    %s101 = sor.u32 %s99, %s100
    %p102 = scmp.eq.s32.totalorder %s101, 0
    %s104 = sadd.s32 %s103, 1
    %s105 = scalar_select %p102, %s103, %s104
    %p108 = pneg %p102
    %p109 = scmp.eq.s32.totalorder %s9, 1
    %p110 = por %p108, %p109
    %p111 = scmp.ne.s32.totalorder %s103, %s106
    %p112 = scmp.eq.s32.totalorder %s9, 0
    %p113 = por %p111, %p112
    %p114 = scmp.ne.s32.totalorder %s103, %s106
    %p115 = scmp.eq.s32.totalorder %s14, 1
    %p116 = por %p114, %p115
    %p117 = scmp.ne.s32.totalorder %s106, %s107
    %p118 = scmp.eq.s32.totalorder %s14, 0
    %p119 = por %p117, %p118
    %p120 = scmp.ne.s32.totalorder %s106, %s107
    %p121 = scmp.eq.s32.totalorder %s15, 1
    %p122 = por %p120, %p121
    %p124 = scmp.ne.s32.totalorder %s107, %s123
    %p125 = scmp.eq.s32.totalorder %s15, 0
    %p126 = por %p124, %p125
    %p127 = scmp.le.s32.totalorder 1, %s9
    %p128 = scmp.lt.s32.totalorder %s9, 3
    %p129 = pnand %p127, %p128
    %p130 = pneg %p129
    // Predicated region
    $region9: #{conv_leaky_forward.3} parent=5 // pred_check
      _
    $region10: #{conv_leaky_forward.3} parent=5 // pred_check_branch
      %132 = sbr.rel (%p129) target = $region12
    $region11: #{conv_leaky_forward.3} parent=5 // pred_region
      %s133 = ssub.s32 %s9, 1
      // Predicated region
      $region13: #{conv_leaky_forward.3} parent=11 // pred_check
        %p134 = pneg %p70
      $region14: #{conv_leaky_forward.3} parent=11 // pred_check_branch
        %136 = sbr.rel (%p134) target = $region16
      $region15: #{conv_leaky_forward.3} parent=11 // pred_region
        _
      $region16: #{conv_leaky_forward.3} parent=11 // pred_fallthru
        _
      // Predicated region
      $region17: #{conv_leaky_forward.3} parent=11 // pred_check
        %p137 = pneg %p91
      $region18: #{conv_leaky_forward.3} parent=11 // pred_check_branch
        %139 = sbr.rel (%p137) target = $region20
      $region19: #{conv_leaky_forward.3} parent=11 // pred_region
        _
      $region20: #{conv_leaky_forward.3} parent=11 // pred_fallthru
        _
    $region12: #{conv_leaky_forward.3} parent=5 // pred_fallthru
      _
    %p140 = scmp.lt.s32.totalorder %s9, 2
    // Predicated region
    $region21: #{conv_leaky_forward.3} parent=5 // pred_check
      %p141 = pneg %p140
    $region22: #{conv_leaky_forward.3} parent=5 // pred_check_branch
      %143 = sbr.rel (%p141) target = $region24
    $region23: #{conv_leaky_forward.3} parent=5 // pred_region
      // Predicated region
      $region25: #{conv_leaky_forward.3} parent=23 // pred_check
        %p144 = pneg %p43
      $region26: #{conv_leaky_forward.3} parent=23 // pred_check_branch
        %146 = sbr.rel (%p144) target = $region28
      $region27: #{conv_leaky_forward.3} parent=23 // pred_region
        %p147 = scmp.lt.s32.totalorder %s16, 1
        %s148 = scalar_select %p147, %s16, 1
        %p149 = scmp.lt.s32.totalorder %s17, 0
        %s150 = scalar_select %p149, %s17, 0
        %s151 = sadd.s32 %s150, %s148
        %s152 = smul.addr %s151, 8
        %s153 = scalar_lea.vmem %s0, %s152
      $region28: #{conv_leaky_forward.3} parent=23 // pred_fallthru
        _
    $region24: #{conv_leaky_forward.3} parent=5 // pred_fallthru
      _
    %p154 = scmp.le.s32.totalorder 1, %s9
    %p155 = scmp.lt.s32.totalorder %s9, 3
    %p156 = pnand %p154, %p155
    %p157 = pneg %p156
    // Predicated region
    $region29: #{conv_leaky_forward.3} parent=5 // pred_check
      _
    $region30: #{conv_leaky_forward.3} parent=5 // pred_check_branch
      %159 = sbr.rel (%p156) target = $region32
    $region31: #{conv_leaky_forward.3} parent=5 // pred_region
      %s160 = ssub.s32 %s9, 1
      %p161 = scmp.lt.s32.totalorder %s18, 1
      %s162 = scalar_select %p161, %s18, 1
      %p163 = scmp.lt.s32.totalorder %s19, 0
      %s164 = scalar_select %p163, %s19, 0
      %s165 = sadd.s32 %s164, %s162
      %s166 = smul.addr %s165, 8
      %s167 = scalar_lea.vmem %s0, %s166
      %p168 = pneg %p49
      %p169 = pneg %p46
      %p170 = pneg %p70
      %p171 = pneg %p67
      %p172 = pneg %p91
      %p173 = pneg %p88
      %p174 = pneg %p119
      %p175 = pneg %p116
      %p176 = scmp.lt.s32.totalorder %s18, 1
      %s177 = scalar_select %p176, %s18, 1
      %p178 = scmp.lt.s32.totalorder %s19, 0
      %s179 = scalar_select %p178, %s19, 0
      %s180 = sadd.s32 %s179, %s177
      %s181 = smul.addr %s180, 8
      %s182 = scalar_lea.vmem %s3, %s181
      %p183 = scmp.lt.s32.totalorder %s18, 1
      %s184 = scalar_select %p183, %s18, 1
      %p185 = scmp.lt.s32.totalorder %s19, 0
      %s186 = scalar_select %p185, %s19, 0
      %s187 = sadd.s32 %s186, %s184
      %s188 = smul.addr %s187, 8
      %s189 = scalar_lea.vmem %s0, %s188
      %p190 = scmp.lt.s32.totalorder %s18, 1
      %s191 = scalar_select %p190, %s18, 1
      %p192 = scmp.lt.s32.totalorder %s19, 0
      %s193 = scalar_select %p192, %s19, 0
      %s194 = sadd.s32 %s193, %s191
      %s195 = smul.addr %s194, 8
      %s196 = scalar_lea.vmem %s3, %s195
      %v197 = vld [vmem:[%s189] sm:$0xff]
      %v198 = vld [vmem:[%s1] sm:$0xff]
      %200 = vset.pattern.permute.xlu0 0
      %201 = vperm.xlu0 %200, %v198
      %v202 = vpop.permute.xlu0 %201
      %v204 = vmul.f32 %v197, %v202
      %v205 = vld [vmem:[%s2] sm:$0xff]
      %207 = vset.pattern.permute.xlu0 0
      %208 = vperm.xlu0 %207, %v205
      %v209 = vpop.permute.xlu0 %208
      %v211 = vadd.f32 %v204, %v209
      %vm212 = vcmp.ge.f32.partialorder %v211, 0.0
      %v213 = vmul.f32 %v211, 0.2
      %v214 = vsel %vm212, %v211, %v213
      %215 = vst [vmem:[%s196] sm:$0xff] %v214
      %p216 = scmp.lt.s32.totalorder %s18, 1
      %s217 = scalar_select %p216, %s18, 1
      %p218 = scmp.lt.s32.totalorder %s19, 0
      %s219 = scalar_select %p218, %s19, 0
      %s220 = sadd.s32 %s219, %s217
      %s221 = smul.addr %s220, 8
      %s222 = scalar_lea.vmem %s3, %s221
      // Predicated region
      $region33: #{conv_leaky_forward.3} parent=31 // pred_check
        %p223 = pneg %p116
      $region34: #{conv_leaky_forward.3} parent=31 // pred_check_branch
        %225 = sbr.rel (%p223) target = $region36
      $region35: #{conv_leaky_forward.3} parent=31 // pred_region
        _
      $region36: #{conv_leaky_forward.3} parent=31 // pred_fallthru
        _
    $region32: #{conv_leaky_forward.3} parent=5 // pred_fallthru
      _
    %p226 = scmp.le.s32.totalorder 2, %s9
    // Predicated region
    $region37: #{conv_leaky_forward.3} parent=5 // pred_check
      %p227 = pneg %p226
    $region38: #{conv_leaky_forward.3} parent=5 // pred_check_branch
      %229 = sbr.rel (%p227) target = $region40
    $region39: #{conv_leaky_forward.3} parent=5 // pred_region
      %s230 = ssub.s32 %s9, 2
      // Predicated region
      $region41: #{conv_leaky_forward.3} parent=39 // pred_check
        %p231 = pneg %p122
      $region42: #{conv_leaky_forward.3} parent=39 // pred_check_branch
        %233 = sbr.rel (%p231) target = $region44
      $region43: #{conv_leaky_forward.3} parent=39 // pred_region
        %p234 = scmp.lt.s32.totalorder %s20, 1
        %s235 = scalar_select %p234, %s20, 1
        %p236 = scmp.lt.s32.totalorder %s21, 0
        %s237 = scalar_select %p236, %s21, 0
        %s238 = sadd.s32 %s237, %s235
        %s239 = smul.addr %s238, 8
        %s240 = scalar_lea.vmem %s3, %s239
      $region44: #{conv_leaky_forward.3} parent=39 // pred_fallthru
        _
    $region40: #{conv_leaky_forward.3} parent=5 // pred_fallthru
      _
  $region6: #{conv_leaky_forward.3} parent=0 // loop_footer
    %s13 = sadd.s32 1, %s9
  $region7: #{conv_leaky_forward.3} parent=0 // loop_footer_branch
    %8 = sbr.rel target = $region3
  $region8: #{conv_leaky_forward.3} parent=0 // loop_exit
    _

</llo_original>
